<compile_context>
chip_gen: v5e
topology: v5e:2x2
jax: 0.10.0
libtpu: 0.0.40
codegen_flags: <defaults>
</compile_context>

<pallas_src>
import jax
import jax.numpy as jnp
from jax.experimental import pallas as pl
from jax.experimental.pallas import tpu as pltpu


# ---------------------------------------------------------------------------
# Fused kernel: the whole ConvEncoder forward as a K-tiled, pipelined mat-vec
# over the folded weight.  Grid: (K // KB,) over the contraction axis
# ("arbitrary" -> VMEM-resident accumulator across steps).
#   xf_ref : (1, KB)     f32   x tile (cast to bf16 in-kernel)
#   w_ref  : (OUT, KB)   bf16  folded weight tile -- lane-dense contraction axis
#   b_ref  : (1, OUT)    f32   folded bias (resident)
#   out_ref: (1, OUT)    f32   accumulator, bias-initialised under pl.when(k == 0)
# ---------------------------------------------------------------------------
def fc_kernel(xf_ref, w_ref, b_ref, out_ref):
    @pl.when(pl.program_id(0) == 0)
    def _init():
        out_ref[...] = b_ref[...]

    xf = xf_ref[...].astype(jnp.bfloat16)          # bf16 MXU inputs, f32 accumulation
    out_ref[...] += jax.lax.dot_general(
        xf, w_ref[...],
        dimension_numbers=(((1,), (1,)), ((), ())),   # contract the lane-dense K axis
        preferred_element_type=jnp.float32)


def _fc_block_k(k_total, out_f, budget_bytes=8 << 20):
    """Largest lane-aligned K tile that divides k_total within a VMEM byte budget.

    The budget covers the double-buffered pipeline copies of the bf16 weight tile
    (out_f x KB x 2 B) and the f32 x tile (1 x KB x 4 B).  8 MiB sits comfortably
    under every generation's default scoped-VMEM limit (v5e: 16 MiB, v6e: 32 MiB,
    v7x: 32 MiB scoped / 64 MiB physical); raise it together with
    CompilerParams(vmem_limit_bytes=...) if a bigger tile is ever wanted.
    At the module's default sizes k_total = N*C*H*W = 2048, so this returns k_total
    and the fc runs as a single grid step.
    """
    per_k_bytes = 2 * (out_f * 2 + 4)     # double-buffered: bf16 weight + f32 x per K elem
    kb_cap = max(128, (budget_bytes // per_k_bytes) // 128 * 128)
    if k_total <= kb_cap:
        return k_total
    for kb in range(kb_cap, 127, -128):
        if k_total % kb == 0:
            return kb
    return k_total  # TODO(synk): pad K to a lane multiple for ragged k_total instead.


def prepare_params(params, in_shape):
    """One-time parameter folding (cache the result; NOT on the per-forward path).

    The module is affine end-to-end, so conv1 -> conv2 -> fc folds exactly into a
    single (OUT, N*C*H*W) weight and (OUT,) bias.  Folding is done in f32 at HIGHEST
    precision; only the final streamed weight is cast to bf16 (once)."""
    N, C, H, W = in_shape
    cin, hw = N * C, H * W
    h1 = params["w2"].shape[0]
    out_f = params["wfc"].shape[0]
    hi = jax.lax.Precision.HIGHEST

    # Conv fold: two 1x1 convs with no nonlinearity == one channel-mixing matrix.
    w_eff = jnp.einsum("ch,hi->ci", params["w2"], params["w1"], precision=hi)     # (h1, cin)
    b_eff = jnp.einsum("ch,h->c", params["w2"], params["b1"], precision=hi) + params["b2"]

    # fc fold: wfc is (OUT, h1*hw) over torch's channel-major flatten -> (OUT, h1, hw).
    wfc3 = params["wfc"].reshape(out_f, h1, hw)
    w_fold = jnp.einsum("ocp,ci->oip", wfc3, w_eff, precision=hi)                 # (OUT, cin, hw)
    b_fold = jnp.einsum("ocp,c->o", wfc3, b_eff, precision=hi) + params["bfc"]    # (OUT,)

    return {
        # Row-major (OUT, cin*hw): contraction index i*hw + p matches x.reshape(-1).
        "w_fold_bf16": w_fold.reshape(out_f, cin * hw).astype(jnp.bfloat16),
        "b_fold": b_fold.reshape(1, out_f).astype(jnp.float32),
    }


def conv_encoder_forward(x, prep):
    """x: (N, C, H, W) float32.  Returns (out_features,) like the torch module."""
    N, C, H, W = x.shape
    k_total = N * C * H * W
    out_f = prep["w_fold_bf16"].shape[0]
    assert prep["w_fold_bf16"].shape[1] == k_total, (prep["w_fold_bf16"].shape, k_total)

    # torch's x.view(-1, H, W) + the folded channel-major flatten compose to the plain
    # row-major flatten of x: index (n*C + c)*H*W + h*W + w.  Free metadata reshape.
    x_flat = x.reshape(1, k_total)

    kb = _fc_block_k(k_total, out_f)
    out2d = pl.pallas_call(
        fc_kernel,
        out_shape=jax.ShapeDtypeStruct((1, out_f), jnp.float32),
        grid_spec=pltpu.PrefetchScalarGridSpec(
            num_scalar_prefetch=0,
            grid=(k_total // kb,),
            in_specs=[
                pl.BlockSpec((1, kb), lambda k: (0, k)),       # x tile
                pl.BlockSpec((out_f, kb), lambda k: (0, k)),   # folded weight tile (lane-dense K)
                pl.BlockSpec((1, out_f), lambda k: (0, 0)),    # bias (resident)
            ],
            out_specs=pl.BlockSpec((1, out_f), lambda k: (0, 0)),  # accumulator (resident)
        ),
        compiler_params=pltpu.CompilerParams(
            dimension_semantics=("arbitrary",)),               # K is a reduction axis
        cost_estimate=pl.CostEstimate(
            flops=2 * out_f * k_total,
            transcendentals=0,
            bytes_accessed=2 * out_f * k_total + 4 * k_total + 8 * out_f),
    )(x_flat, prep["w_fold_bf16"], prep["b_fold"])
    return out2d[0]


def init_params(key, in_shape, hid=(256, 128), out_features=32):
    """Deterministic synthetic parameters with the shapes ConvEncoder.__init__ creates."""
    N, C, H, W = in_shape
    cin, hw = N * C, H * W
    ks = jax.random.split(key, 6)
    s = 0.1
    return {
        "w1": s * jax.random.normal(ks[0], (hid[0], cin), jnp.float32),     # Conv2d(cin, hid0, 1)
        "b1": s * jax.random.normal(ks[1], (hid[0],), jnp.float32),
        "w2": s * jax.random.normal(ks[2], (hid[1], hid[0]), jnp.float32),  # Conv2d(hid0, hid1, 1)
        "b2": s * jax.random.normal(ks[3], (hid[1],), jnp.float32),
        "wfc": s * jax.random.normal(ks[4], (out_features, hid[1] * hw), jnp.float32),
        "bfc": s * jax.random.normal(ks[5], (out_features,), jnp.float32),
    }


def ref_forward_f32(x, params):
    """Pure-JAX f32 reference mirroring the PyTorch forward exactly (no folding)."""
    N, C, H, W = x.shape
    x2 = x.reshape(N * C, H * W)
    y1 = params["w1"] @ x2 + params["b1"][:, None]
    y2 = params["w2"] @ y1 + params["b2"][:, None]
    return params["wfc"] @ y2.reshape(-1) + params["bfc"]


def ref_forward_folded(x, prep):
    """Reference with the kernel's precision choices (folded bf16 weight, bf16 x,
    f32 accumulation) so the gating check measures kernel correctness only, not the
    deliberate bf16 quantisation of the streamed operands."""
    xq = x.reshape(-1).astype(jnp.bfloat16).astype(jnp.float32)
    wq = prep["w_fold_bf16"].astype(jnp.float32)
    return wq @ xq + prep["b_fold"][0]


if __name__ == "__main__":
    in_shape = (2, 4, 16, 16)   # (N, C, H, W): conv in-channels = N*C = 8, HW = 256
    hid = (256, 128)            # ConvEncoder defaults -> fc in_features = 128*256 = 32768
    out_features = 32

    key = jax.random.PRNGKey(0)
    kx, kp = jax.random.split(key)
    x = jax.random.normal(kx, in_shape, jnp.float32)
    params = init_params(kp, in_shape, hid=hid, out_features=out_features)

    prep = prepare_params(params, in_shape)   # one-time fold (cache in real use)
    fwd = jax.jit(conv_encoder_forward)
    out = jax.block_until_ready(fwd(x, prep))

    ref_q = ref_forward_folded(x, prep)
    ref32 = ref_forward_f32(x, params)
    assert out.shape == (out_features,), out.shape
    # Gating check: same-precision reference (differences are accumulation order only).
    assert jnp.allclose(out, ref_q, atol=2e-2, rtol=2e-2), (out, ref_q)
    # Torch-faithful f32 reference; tolerance budgets the deliberate bf16 quantisation
    # of the folded weight / x operands.
    assert jnp.allclose(out, ref32, atol=0.5, rtol=0.1), (out, ref32)
    print("KERNEL_OK")
</pallas_src>

<mosaic_0001>
module attributes {stable_mosaic.version = 11 : i64} {
  func.func @fc_kernel(%arg0: i32, %arg1: memref<1x2048xf32, #tpu.memory_space<vmem>>, %arg2: memref<32x2048xbf16, #tpu.memory_space<vmem>>, %arg3: memref<1x32xf32, #tpu.memory_space<vmem>>, %arg4: memref<1x32xf32, #tpu.memory_space<vmem>>) attributes {dimension_semantics = [#tpu.dimension_semantics<arbitrary>], iteration_bounds = array<i64: 1>, scalar_prefetch = 0 : i64, scratch_operands = 0 : i64, tpu.core_type = #tpu.core_type<tc>, window_params = [{transform_indices = @transform_0, window_bounds = array<i64: 1, 2048>}, {transform_indices = @transform_1, window_bounds = array<i64: 32, 2048>}, {pipeline_mode = #tpu.pipeline_mode<synchronous>, transform_indices = @transform_2, window_bounds = array<i64: 1, 32>}, {pipeline_mode = #tpu.pipeline_mode<synchronous>, transform_indices = @transform_3, window_bounds = array<i64: 1, 32>}]} {
    %c0_i32 = arith.constant 0 : i32
    %0 = arith.cmpi eq, %arg0, %c0_i32 : i32
    %1 = arith.extui %0 : i1 to i32
    %c0_i32_0 = arith.constant 0 : i32
    %2 = arith.cmpi ne, %1, %c0_i32_0 : i32
    scf.if %2 {
      %c0_8 = arith.constant 0 : index
      %c0_9 = arith.constant 0 : index
      %10 = vector.load %arg3[%c0_8, %c0_9] : memref<1x32xf32, #tpu.memory_space<vmem>>, vector<1x32xf32>
      %c0_10 = arith.constant 0 : index
      %c0_11 = arith.constant 0 : index
      %11 = vector.load %arg4[%c0_10, %c0_11] : memref<1x32xf32, #tpu.memory_space<vmem>>, vector<1x32xf32>
      tpu.vector_store %arg4[%c0_10, %c0_11], %10 {strides = array<i32>} : memref<1x32xf32, #tpu.memory_space<vmem>>, vector<1x32xf32>,
    } else {
    }
    %c0 = arith.constant 0 : index
    %c0_1 = arith.constant 0 : index
    %3 = vector.load %arg1[%c0, %c0_1] : memref<1x2048xf32, #tpu.memory_space<vmem>>, vector<1x2048xf32>
    %4 = arith.truncf %3 : vector<1x2048xf32> to vector<1x2048xbf16>
    %c0_2 = arith.constant 0 : index
    %c0_3 = arith.constant 0 : index
    %5 = vector.load %arg4[%c0_2, %c0_3] : memref<1x32xf32, #tpu.memory_space<vmem>>, vector<1x32xf32>
    %c0_4 = arith.constant 0 : index
    %c0_5 = arith.constant 0 : index
    %6 = vector.load %arg2[%c0_4, %c0_5] : memref<32x2048xbf16, #tpu.memory_space<vmem>>, vector<32x2048xbf16>
    %cst = arith.constant dense<0.000000e+00> : vector<1x32xf32>
    %7 = tpu.matmul %4, %6, %cst {dimension_numbers = #tpu.dot_dimension_numbers<[1], [1], [0], [0], [0, 0, 1, 0], [], []>} : vector<1x2048xbf16>, vector<32x2048xbf16>, vector<1x32xf32> -> vector<1x32xf32>
    %8 = arith.addf %5, %7 : vector<1x32xf32>
    %c0_6 = arith.constant 0 : index
    %c0_7 = arith.constant 0 : index
    %9 = vector.load %arg4[%c0_6, %c0_7] : memref<1x32xf32, #tpu.memory_space<vmem>>, vector<1x32xf32>
    tpu.vector_store %arg4[%c0_6, %c0_7], %8 {strides = array<i32>} : memref<1x32xf32, #tpu.memory_space<vmem>>, vector<1x32xf32>,
    return
  }
  func.func @transform_0(%arg0: i32) -> (i32, i32) {
    %c0_i32 = arith.constant 0 : i32
    %c0_i32_0 = arith.constant 0 : i32
    return %c0_i32, %arg0 : i32, i32
  }
  func.func @transform_1(%arg0: i32) -> (i32, i32) {
    %c0_i32 = arith.constant 0 : i32
    %c0_i32_0 = arith.constant 0 : i32
    return %c0_i32, %arg0 : i32, i32
  }
  func.func @transform_2(%arg0: i32) -> (i32, i32) {
    %c0_i32 = arith.constant 0 : i32
    %c0_i32_0 = arith.constant 0 : i32
    %c0_i32_1 = arith.constant 0 : i32
    return %c0_i32, %c0_i32_0 : i32, i32
  }
  func.func @transform_3(%arg0: i32) -> (i32, i32) {
    %c0_i32 = arith.constant 0 : i32
    %c0_i32_0 = arith.constant 0 : i32
    %c0_i32_1 = arith.constant 0 : i32
    return %c0_i32, %c0_i32_0 : i32, i32
  }
}

</mosaic_0001>

<llo_original>
// kernel: conv_encoder_forward.1
$region0: #{conv_encoder_forward.1}
  #allocation0 [shape = 'u32[]', space=smem, size = 0x4, offset = 0x4, fixed_abs, tag = 'smem constant byte address 0x4 - core index']
  #allocation1 [shape = 'u32[72,128]{1,0:T(1,128)}', space=vmem, size = 0x9000, scoped, tag = 'internal scratch']
  %s0 = inlined_call_operand.vmem [shape: f32[1,2048], index: 0, kind: input, shape index: {}]
  %s1 = inlined_call_operand.hbm [shape: bf16[32,2048], index: 1, kind: input, shape index: {}]
  %s2 = inlined_call_operand.vmem [shape: f32[1,32], index: 2, kind: input, shape index: {}]
  %s3 = inlined_call_operand.hbm [shape: f32[1,32], index: 3, kind: output, shape index: {}]
  %s4 = sld [smem:[#allocation0]]
  $region30: #{conv_encoder_forward.1} parent=0
    _
  %s6 = ssub.s32 1, %s4
  %s7 = scalar_select 0, %s6, %s4
  $region1: #{conv_encoder_forward.1} parent=0
    #allocation2 [shape = 'u8[131072]{0}', space=vmem, size = 0x20000, scoped, tag = 'input window, operand 1, single buffered']
    #allocation3 [shape = 's32[1]{0}', space=sflag, size = 0x4, scoped, tag = 'scoped memory for conv_encoder_forward.1']
    #allocation4 [shape = 's32[1]{0}', space=sflag, size = 0x4, scoped, tag = 'scoped memory for conv_encoder_forward.1']
    #allocation5 [shape = 'u8[512]{0}', space=vmem, size = 0x400, scoped, tag = 'output window, operand 0, single buffered']
    %8 = vsyncpa [#allocation3], 0
    %9 = vsyncpa [#allocation4], 0
    // Predicated region
    $region2: #{conv_encoder_forward.1} parent=1 // pred_check
      _
    $region3: #{conv_encoder_forward.1} parent=1 // pred_check_branch
      %11 = sbr.rel (0) target = $region5
    $region4: #{conv_encoder_forward.1} parent=1 // pred_region
      _
    $region5: #{conv_encoder_forward.1} parent=1 // pred_fallthru
      _
    // Predicated region
    $region6: #{conv_encoder_forward.1} parent=1 // pred_check
      _
    $region7: #{conv_encoder_forward.1} parent=1 // pred_check_branch
      %13 = sbr.rel (0) target = $region9
    $region8: #{conv_encoder_forward.1} parent=1 // pred_region
      %15 = vsyncadd [#allocation3], 0
      %s16 = sshll.u32 %s1, 4
      %s17 = int_to_ptr.hbm [resolvable:$true] %s16
      %s18 = sshll.u32 [#allocation2], 4
      %s19 = int_to_ptr.vmem [resolvable:$true] %s18
      %24 = dma.hbm_to_vmem [thread:$0]  %s17, 4096, %s19, [#allocation3], 1024, 1024, 64
    $region9: #{conv_encoder_forward.1} parent=1 // pred_fallthru
      _
    // Predicated region
    $region10: #{conv_encoder_forward.1} parent=1 // pred_check
      _
    $region11: #{conv_encoder_forward.1} parent=1 // pred_check_branch
      %26 = sbr.rel (0) target = $region13
    $region12: #{conv_encoder_forward.1} parent=1 // pred_region
      _
    $region13: #{conv_encoder_forward.1} parent=1 // pred_fallthru
      _
    // Predicated region
    $region14: #{conv_encoder_forward.1} parent=1 // pred_check
      _
    $region15: #{conv_encoder_forward.1} parent=1 // pred_check_branch
      %28 = sbr.rel (0) target = $region17
    $region16: #{conv_encoder_forward.1} parent=1 // pred_region
      %30 = dma.done [#allocation3], 4096
    $region17: #{conv_encoder_forward.1} parent=1 // pred_fallthru
      _
    %p32 = scmp.eq.s32.totalorder 0, 0
    // Predicated region
    $region18: #{conv_encoder_forward.1} parent=1 // pred_check
      %p33 = pneg %p32
    $region19: #{conv_encoder_forward.1} parent=1 // pred_check_branch
      %35 = sbr.rel (%p33) target = $region21
    $region20: #{conv_encoder_forward.1} parent=1 // pred_region
      %v36 = vld [vmem:[%s2] sm:$0x1]
      %vm37 = vcmask 253952
      %38 = vst.msk [vmem:[#allocation5] sm:$0x1] %vm37, %v36
    $region21: #{conv_encoder_forward.1} parent=1 // pred_fallthru
      _
    %v39 = vld [vmem:[%s0] sm:$0xff]
    %v40 = vld [vmem:[%s0 + $0x8] sm:$0xff]
    %v43 = vperm.slane %v39, 0
    %v44 = vperm.slane %v39, 1
    %v45 = vperm.slane %v39, 2
    %v46 = vperm.slane %v39, 3
    %v47 = vperm.slane %v39, 4
    %v48 = vperm.slane %v39, 5
    %v49 = vperm.slane %v39, 6
    %v50 = vperm.slane %v39, 7
    %v51 = vperm.slane %v40, 0
    %v52 = vperm.slane %v40, 1
    %v53 = vperm.slane %v40, 2
    %v54 = vperm.slane %v40, 3
    %v55 = vperm.slane %v40, 4
    %v56 = vperm.slane %v40, 5
    %v57 = vperm.slane %v40, 6
    %v58 = vperm.slane %v40, 7
    %v75 = vpack.c.bf16 %v43, %v43
    %v76 = vpack.c.bf16 %v44, %v44
    %v77 = vpack.c.bf16 %v45, %v45
    %v78 = vpack.c.bf16 %v46, %v46
    %v79 = vpack.c.bf16 %v47, %v47
    %v80 = vpack.c.bf16 %v48, %v48
    %v81 = vpack.c.bf16 %v49, %v49
    %v82 = vpack.c.bf16 %v50, %v50
    %v83 = vpack.c.bf16 %v51, %v51
    %v84 = vpack.c.bf16 %v52, %v52
    %v85 = vpack.c.bf16 %v53, %v53
    %v86 = vpack.c.bf16 %v54, %v54
    %v87 = vpack.c.bf16 %v55, %v55
    %v88 = vpack.c.bf16 %v56, %v56
    %v89 = vpack.c.bf16 %v57, %v57
    %v90 = vpack.c.bf16 %v58, %v58
    %v91 = vld [vmem:[#allocation5] sm:$0x1]
    %v92 = vld [vmem:[#allocation2] sm:$0xff]
    %v93 = vld [vmem:[#allocation2 + $0x8] sm:$0xff]
    %v94 = vld [vmem:[#allocation2 + $0x10] sm:$0xff]
    %v95 = vld [vmem:[#allocation2 + $0x18] sm:$0xff]
    %v96 = vld [vmem:[#allocation2 + $0x20] sm:$0xff]
    %v97 = vld [vmem:[#allocation2 + $0x28] sm:$0xff]
    %v98 = vld [vmem:[#allocation2 + $0x30] sm:$0xff]
    %v99 = vld [vmem:[#allocation2 + $0x38] sm:$0xff]
    %v100 = vld [vmem:[#allocation2 + $0x40] sm:$0xff]
    %v101 = vld [vmem:[#allocation2 + $0x48] sm:$0xff]
    %v102 = vld [vmem:[#allocation2 + $0x50] sm:$0xff]
    %v103 = vld [vmem:[#allocation2 + $0x58] sm:$0xff]
    %v104 = vld [vmem:[#allocation2 + $0x60] sm:$0xff]
    %v105 = vld [vmem:[#allocation2 + $0x68] sm:$0xff]
    %v106 = vld [vmem:[#allocation2 + $0x70] sm:$0xff]
    %v107 = vld [vmem:[#allocation2 + $0x78] sm:$0xff]
    %v108 = vld [vmem:[#allocation2 + $0x80] sm:$0xff]
    %v109 = vld [vmem:[#allocation2 + $0x88] sm:$0xff]
    %v110 = vld [vmem:[#allocation2 + $0x90] sm:$0xff]
    %v111 = vld [vmem:[#allocation2 + $0x98] sm:$0xff]
    %v112 = vld [vmem:[#allocation2 + $0xa0] sm:$0xff]
    %v113 = vld [vmem:[#allocation2 + $0xa8] sm:$0xff]
    %v114 = vld [vmem:[#allocation2 + $0xb0] sm:$0xff]
    %v115 = vld [vmem:[#allocation2 + $0xb8] sm:$0xff]
    %v116 = vld [vmem:[#allocation2 + $0xc0] sm:$0xff]
    %v117 = vld [vmem:[#allocation2 + $0xc8] sm:$0xff]
    %v118 = vld [vmem:[#allocation2 + $0xd0] sm:$0xff]
    %v119 = vld [vmem:[#allocation2 + $0xd8] sm:$0xff]
    %v120 = vld [vmem:[#allocation2 + $0xe0] sm:$0xff]
    %v121 = vld [vmem:[#allocation2 + $0xe8] sm:$0xff]
    %v122 = vld [vmem:[#allocation2 + $0xf0] sm:$0xff]
    %v123 = vld [vmem:[#allocation2 + $0xf8] sm:$0xff]
    %v156 = vunpack.c.l.b16 %v92
    %v157 = vunpack.c.h.b16 %v92
    %v158 = vunpack.c.l.b16 %v93
    %v159 = vunpack.c.h.b16 %v93
    %v160 = vunpack.c.l.b16 %v94
    %v161 = vunpack.c.h.b16 %v94
    %v162 = vunpack.c.l.b16 %v95
    %v163 = vunpack.c.h.b16 %v95
    %v164 = vunpack.c.l.b16 %v96
    %v165 = vunpack.c.h.b16 %v96
    %v166 = vunpack.c.l.b16 %v97
    %v167 = vunpack.c.h.b16 %v97
    %v168 = vunpack.c.l.b16 %v98
    %v169 = vunpack.c.h.b16 %v98
    %v170 = vunpack.c.l.b16 %v99
    %v171 = vunpack.c.h.b16 %v99
    %v172 = vunpack.c.l.b16 %v100
    %v173 = vunpack.c.h.b16 %v100
    %v174 = vunpack.c.l.b16 %v101
    %v175 = vunpack.c.h.b16 %v101
    %v176 = vunpack.c.l.b16 %v102
    %v177 = vunpack.c.h.b16 %v102
    %v178 = vunpack.c.l.b16 %v103
    %v179 = vunpack.c.h.b16 %v103
    %v180 = vunpack.c.l.b16 %v104
    %v181 = vunpack.c.h.b16 %v104
    %v182 = vunpack.c.l.b16 %v105
    %v183 = vunpack.c.h.b16 %v105
    %v184 = vunpack.c.l.b16 %v106
    %v185 = vunpack.c.h.b16 %v106
    %v186 = vunpack.c.l.b16 %v107
    %v187 = vunpack.c.h.b16 %v107
    %v188 = vunpack.c.l.b16 %v108
    %v189 = vunpack.c.h.b16 %v108
    %v190 = vunpack.c.l.b16 %v109
    %v191 = vunpack.c.h.b16 %v109
    %v192 = vunpack.c.l.b16 %v110
    %v193 = vunpack.c.h.b16 %v110
    %v194 = vunpack.c.l.b16 %v111
    %v195 = vunpack.c.h.b16 %v111
    %v196 = vunpack.c.l.b16 %v112
    %v197 = vunpack.c.h.b16 %v112
    %v198 = vunpack.c.l.b16 %v113
    %v199 = vunpack.c.h.b16 %v113
    %v200 = vunpack.c.l.b16 %v114
    %v201 = vunpack.c.h.b16 %v114
    %v202 = vunpack.c.l.b16 %v115
    %v203 = vunpack.c.h.b16 %v115
    %v204 = vunpack.c.l.b16 %v116
    %v205 = vunpack.c.h.b16 %v116
    %v206 = vunpack.c.l.b16 %v117
    %v207 = vunpack.c.h.b16 %v117
    %v208 = vunpack.c.l.b16 %v118
    %v209 = vunpack.c.h.b16 %v118
    %v210 = vunpack.c.l.b16 %v119
    %v211 = vunpack.c.h.b16 %v119
    %v212 = vunpack.c.l.b16 %v120
    %v213 = vunpack.c.h.b16 %v120
    %v214 = vunpack.c.l.b16 %v121
    %v215 = vunpack.c.h.b16 %v121
    %v216 = vunpack.c.l.b16 %v122
    %v217 = vunpack.c.h.b16 %v122
    %v218 = vunpack.c.l.b16 %v123
    %v219 = vunpack.c.h.b16 %v123
    %v220 = vpack.c.b16 %v172, %v156
    %v221 = vpack.c.b16 %v173, %v157
    %v222 = vpack.c.b16 %v174, %v158
    %v223 = vpack.c.b16 %v175, %v159
    %v224 = vpack.c.b16 %v176, %v160
    %v225 = vpack.c.b16 %v177, %v161
    %v226 = vpack.c.b16 %v178, %v162
    %v227 = vpack.c.b16 %v179, %v163
    %v228 = vpack.c.b16 %v180, %v164
    %v229 = vpack.c.b16 %v181, %v165
    %v230 = vpack.c.b16 %v182, %v166
    %v231 = vpack.c.b16 %v183, %v167
    %v232 = vpack.c.b16 %v184, %v168
    %v233 = vpack.c.b16 %v185, %v169
    %v234 = vpack.c.b16 %v186, %v170
    %v235 = vpack.c.b16 %v187, %v171
    %v236 = vpack.c.b16 %v204, %v188
    %v237 = vpack.c.b16 %v205, %v189
    %v238 = vpack.c.b16 %v206, %v190
    %v239 = vpack.c.b16 %v207, %v191
    %v240 = vpack.c.b16 %v208, %v192
    %v241 = vpack.c.b16 %v209, %v193
    %v242 = vpack.c.b16 %v210, %v194
    %v243 = vpack.c.b16 %v211, %v195
    %v244 = vpack.c.b16 %v212, %v196
    %v245 = vpack.c.b16 %v213, %v197
    %v246 = vpack.c.b16 %v214, %v198
    %v247 = vpack.c.b16 %v215, %v199
    %v248 = vpack.c.b16 %v216, %v200
    %v249 = vpack.c.b16 %v217, %v201
    %v250 = vpack.c.b16 %v218, %v202
    %v251 = vpack.c.b16 %v219, %v203
    %284 = vmatpush.bf16.xpose.msra.mxu0 0
    %285 = vmatpush.bf16.xpose.msra.mxu0 0
    %286 = vmatpush.bf16.xpose.msra.mxu0 0
    %287 = vmatpush.bf16.xpose.msra.mxu0 0
    %288 = vmatpush.bf16.xpose.msra.mxu0 0
    %289 = vmatpush.bf16.xpose.msra.mxu0 0
    %290 = vmatpush.bf16.xpose.msra.mxu0 %v236
    %291 = vmatpush.bf16.xpose.msra.mxu0 %v220
    %292 = vmatmul.bf16.gmra.mxu0 %v75
    %v293 = vpop.f32.mrf.mxu0
    %v294 = vadd.f32 0.0, %v293
    %v295 = vpop.f32.mrf.mxu0
    %296 = vdwg.mxu0
    %297 = vmatpush.bf16.xpose.msra.mxu0 0
    %298 = vmatpush.bf16.xpose.msra.mxu0 0
    %299 = vmatpush.bf16.xpose.msra.mxu0 0
    %300 = vmatpush.bf16.xpose.msra.mxu0 0
    %301 = vmatpush.bf16.xpose.msra.mxu0 0
    %302 = vmatpush.bf16.xpose.msra.mxu0 0
    %303 = vmatpush.bf16.xpose.msra.mxu0 %v237
    %304 = vmatpush.bf16.xpose.msra.mxu0 %v221
    %305 = vmatmul.bf16.gmra.mxu0 %v76
    %v306 = vpop.f32.mrf.mxu0
    %v307 = vadd.f32 %v294, %v306
    %v308 = vpop.f32.mrf.mxu0
    %309 = vdwg.mxu0
    %310 = vmatpush.bf16.xpose.msra.mxu0 0
    %311 = vmatpush.bf16.xpose.msra.mxu0 0
    %312 = vmatpush.bf16.xpose.msra.mxu0 0
    %313 = vmatpush.bf16.xpose.msra.mxu0 0
    %314 = vmatpush.bf16.xpose.msra.mxu0 0
    %315 = vmatpush.bf16.xpose.msra.mxu0 0
    %316 = vmatpush.bf16.xpose.msra.mxu0 %v238
    %317 = vmatpush.bf16.xpose.msra.mxu0 %v222
    %318 = vmatmul.bf16.gmra.mxu0 %v77
    %v319 = vpop.f32.mrf.mxu0
    %v320 = vadd.f32 %v307, %v319
    %v321 = vpop.f32.mrf.mxu0
    %322 = vdwg.mxu0
    %323 = vmatpush.bf16.xpose.msra.mxu0 0
    %324 = vmatpush.bf16.xpose.msra.mxu0 0
    %325 = vmatpush.bf16.xpose.msra.mxu0 0
    %326 = vmatpush.bf16.xpose.msra.mxu0 0
    %327 = vmatpush.bf16.xpose.msra.mxu0 0
    %328 = vmatpush.bf16.xpose.msra.mxu0 0
    %329 = vmatpush.bf16.xpose.msra.mxu0 %v239
    %330 = vmatpush.bf16.xpose.msra.mxu0 %v223
    %331 = vmatmul.bf16.gmra.mxu0 %v78
    %v332 = vpop.f32.mrf.mxu0
    %v333 = vadd.f32 %v320, %v332
    %v334 = vpop.f32.mrf.mxu0
    %335 = vdwg.mxu0
    %336 = vmatpush.bf16.xpose.msra.mxu0 0
    %337 = vmatpush.bf16.xpose.msra.mxu0 0
    %338 = vmatpush.bf16.xpose.msra.mxu0 0
    %339 = vmatpush.bf16.xpose.msra.mxu0 0
    %340 = vmatpush.bf16.xpose.msra.mxu0 0
    %341 = vmatpush.bf16.xpose.msra.mxu0 0
    %342 = vmatpush.bf16.xpose.msra.mxu0 %v240
    %343 = vmatpush.bf16.xpose.msra.mxu0 %v224
    %344 = vmatmul.bf16.gmra.mxu0 %v79
    %v345 = vpop.f32.mrf.mxu0
    %v346 = vadd.f32 %v333, %v345
    %v347 = vpop.f32.mrf.mxu0
    %348 = vdwg.mxu0
    %349 = vmatpush.bf16.xpose.msra.mxu0 0
    %350 = vmatpush.bf16.xpose.msra.mxu0 0
    %351 = vmatpush.bf16.xpose.msra.mxu0 0
    %352 = vmatpush.bf16.xpose.msra.mxu0 0
    %353 = vmatpush.bf16.xpose.msra.mxu0 0
    %354 = vmatpush.bf16.xpose.msra.mxu0 0
    %355 = vmatpush.bf16.xpose.msra.mxu0 %v241
    %356 = vmatpush.bf16.xpose.msra.mxu0 %v225
    %357 = vmatmul.bf16.gmra.mxu0 %v80
    %v358 = vpop.f32.mrf.mxu0
    %v359 = vadd.f32 %v346, %v358
    %v360 = vpop.f32.mrf.mxu0
    %361 = vdwg.mxu0
    %362 = vmatpush.bf16.xpose.msra.mxu0 0
    %363 = vmatpush.bf16.xpose.msra.mxu0 0
    %364 = vmatpush.bf16.xpose.msra.mxu0 0
    %365 = vmatpush.bf16.xpose.msra.mxu0 0
    %366 = vmatpush.bf16.xpose.msra.mxu0 0
    %367 = vmatpush.bf16.xpose.msra.mxu0 0
    %368 = vmatpush.bf16.xpose.msra.mxu0 %v242
    %369 = vmatpush.bf16.xpose.msra.mxu0 %v226
    %370 = vmatmul.bf16.gmra.mxu0 %v81
    %v371 = vpop.f32.mrf.mxu0
    %v372 = vadd.f32 %v359, %v371
    %v373 = vpop.f32.mrf.mxu0
    %374 = vdwg.mxu0
    %375 = vmatpush.bf16.xpose.msra.mxu0 0
    %376 = vmatpush.bf16.xpose.msra.mxu0 0
    %377 = vmatpush.bf16.xpose.msra.mxu0 0
    %378 = vmatpush.bf16.xpose.msra.mxu0 0
    %379 = vmatpush.bf16.xpose.msra.mxu0 0
    %380 = vmatpush.bf16.xpose.msra.mxu0 0
    %381 = vmatpush.bf16.xpose.msra.mxu0 %v243
    %382 = vmatpush.bf16.xpose.msra.mxu0 %v227
    %383 = vmatmul.bf16.gmra.mxu0 %v82
    %v384 = vpop.f32.mrf.mxu0
    %v385 = vadd.f32 %v372, %v384
    %v386 = vpop.f32.mrf.mxu0
    %387 = vdwg.mxu0
    %388 = vmatpush.bf16.xpose.msra.mxu0 0
    %389 = vmatpush.bf16.xpose.msra.mxu0 0
    %390 = vmatpush.bf16.xpose.msra.mxu0 0
    %391 = vmatpush.bf16.xpose.msra.mxu0 0
    %392 = vmatpush.bf16.xpose.msra.mxu0 0
    %393 = vmatpush.bf16.xpose.msra.mxu0 0
    %394 = vmatpush.bf16.xpose.msra.mxu0 %v244
    %395 = vmatpush.bf16.xpose.msra.mxu0 %v228
    %396 = vmatmul.bf16.gmra.mxu0 %v83
    %v397 = vpop.f32.mrf.mxu0
    %v398 = vadd.f32 %v385, %v397
    %v399 = vpop.f32.mrf.mxu0
    %400 = vdwg.mxu0
    %401 = vmatpush.bf16.xpose.msra.mxu0 0
    %402 = vmatpush.bf16.xpose.msra.mxu0 0
    %403 = vmatpush.bf16.xpose.msra.mxu0 0
    %404 = vmatpush.bf16.xpose.msra.mxu0 0
    %405 = vmatpush.bf16.xpose.msra.mxu0 0
    %406 = vmatpush.bf16.xpose.msra.mxu0 0
    %407 = vmatpush.bf16.xpose.msra.mxu0 %v245
    %408 = vmatpush.bf16.xpose.msra.mxu0 %v229
    %409 = vmatmul.bf16.gmra.mxu0 %v84
    %v410 = vpop.f32.mrf.mxu0
    %v411 = vadd.f32 %v398, %v410
    %v412 = vpop.f32.mrf.mxu0
    %413 = vdwg.mxu0
    %414 = vmatpush.bf16.xpose.msra.mxu0 0
    %415 = vmatpush.bf16.xpose.msra.mxu0 0
    %416 = vmatpush.bf16.xpose.msra.mxu0 0
    %417 = vmatpush.bf16.xpose.msra.mxu0 0
    %418 = vmatpush.bf16.xpose.msra.mxu0 0
    %419 = vmatpush.bf16.xpose.msra.mxu0 0
    %420 = vmatpush.bf16.xpose.msra.mxu0 %v246
    %421 = vmatpush.bf16.xpose.msra.mxu0 %v230
    %422 = vmatmul.bf16.gmra.mxu0 %v85
    %v423 = vpop.f32.mrf.mxu0
    %v424 = vadd.f32 %v411, %v423
    %v425 = vpop.f32.mrf.mxu0
    %426 = vdwg.mxu0
    %427 = vmatpush.bf16.xpose.msra.mxu0 0
    %428 = vmatpush.bf16.xpose.msra.mxu0 0
    %429 = vmatpush.bf16.xpose.msra.mxu0 0
    %430 = vmatpush.bf16.xpose.msra.mxu0 0
    %431 = vmatpush.bf16.xpose.msra.mxu0 0
    %432 = vmatpush.bf16.xpose.msra.mxu0 0
    %433 = vmatpush.bf16.xpose.msra.mxu0 %v247
    %434 = vmatpush.bf16.xpose.msra.mxu0 %v231
    %435 = vmatmul.bf16.gmra.mxu0 %v86
    %v436 = vpop.f32.mrf.mxu0
    %v437 = vadd.f32 %v424, %v436
    %v438 = vpop.f32.mrf.mxu0
    %439 = vdwg.mxu0
    %440 = vmatpush.bf16.xpose.msra.mxu0 0
    %441 = vmatpush.bf16.xpose.msra.mxu0 0
    %442 = vmatpush.bf16.xpose.msra.mxu0 0
    %443 = vmatpush.bf16.xpose.msra.mxu0 0
    %444 = vmatpush.bf16.xpose.msra.mxu0 0
    %445 = vmatpush.bf16.xpose.msra.mxu0 0
    %446 = vmatpush.bf16.xpose.msra.mxu0 %v248
    %447 = vmatpush.bf16.xpose.msra.mxu0 %v232
    %448 = vmatmul.bf16.gmra.mxu0 %v87
    %v449 = vpop.f32.mrf.mxu0
    %v450 = vadd.f32 %v437, %v449
    %v451 = vpop.f32.mrf.mxu0
    %452 = vdwg.mxu0
    %453 = vmatpush.bf16.xpose.msra.mxu0 0
    %454 = vmatpush.bf16.xpose.msra.mxu0 0
    %455 = vmatpush.bf16.xpose.msra.mxu0 0
    %456 = vmatpush.bf16.xpose.msra.mxu0 0
    %457 = vmatpush.bf16.xpose.msra.mxu0 0
    %458 = vmatpush.bf16.xpose.msra.mxu0 0
    %459 = vmatpush.bf16.xpose.msra.mxu0 %v249
    %460 = vmatpush.bf16.xpose.msra.mxu0 %v233
    %461 = vmatmul.bf16.gmra.mxu0 %v88
    %v462 = vpop.f32.mrf.mxu0
    %v463 = vadd.f32 %v450, %v462
    %v464 = vpop.f32.mrf.mxu0
    %465 = vdwg.mxu0
    %466 = vmatpush.bf16.xpose.msra.mxu0 0
    %467 = vmatpush.bf16.xpose.msra.mxu0 0
    %468 = vmatpush.bf16.xpose.msra.mxu0 0
    %469 = vmatpush.bf16.xpose.msra.mxu0 0
    %470 = vmatpush.bf16.xpose.msra.mxu0 0
    %471 = vmatpush.bf16.xpose.msra.mxu0 0
    %472 = vmatpush.bf16.xpose.msra.mxu0 %v250
    %473 = vmatpush.bf16.xpose.msra.mxu0 %v234
    %474 = vmatmul.bf16.gmra.mxu0 %v89
    %v475 = vpop.f32.mrf.mxu0
    %v476 = vadd.f32 %v463, %v475
    %v477 = vpop.f32.mrf.mxu0
    %478 = vdwg.mxu0
    %479 = vmatpush.bf16.xpose.msra.mxu0 0
    %480 = vmatpush.bf16.xpose.msra.mxu0 0
    %481 = vmatpush.bf16.xpose.msra.mxu0 0
    %482 = vmatpush.bf16.xpose.msra.mxu0 0
    %483 = vmatpush.bf16.xpose.msra.mxu0 0
    %484 = vmatpush.bf16.xpose.msra.mxu0 0
    %485 = vmatpush.bf16.xpose.msra.mxu0 %v251
    %486 = vmatpush.bf16.xpose.msra.mxu0 %v235
    %487 = vmatmul.bf16.gmra.mxu0 %v90
    %v488 = vpop.f32.mrf.mxu0
    %v489 = vadd.f32 %v476, %v488
    %v490 = vpop.f32.mrf.mxu0
    %491 = vdwg.mxu0
    %v492 = vadd.f32 %v91, %v489
    %vm493 = vcmask 253952
    %494 = vst.msk [vmem:[#allocation5] sm:$0x1] %vm493, %v492
    // Predicated region
    $region22: #{conv_encoder_forward.1} parent=1 // pred_check
      _
    $region23: #{conv_encoder_forward.1} parent=1 // pred_check_branch
      %496 = sbr.rel (0) target = $region25
    $region24: #{conv_encoder_forward.1} parent=1 // pred_region
      %498 = vsyncadd [#allocation4], 0
      %s500 = sshll.u32 [#allocation5], 4
      %s501 = int_to_ptr.vmem [resolvable:$true] %s500
      %s502 = sshll.u32 %s3, 4
      %s503 = int_to_ptr.hbm [resolvable:$true] %s502
      %505 = dma.vmem_to_hbm [thread:$0]  %s501, 16, %s503, [#allocation4]
    $region25: #{conv_encoder_forward.1} parent=1 // pred_fallthru
      _
    // Predicated region
    $region26: #{conv_encoder_forward.1} parent=1 // pred_check
      _
    $region27: #{conv_encoder_forward.1} parent=1 // pred_check_branch
      %507 = sbr.rel (0) target = $region29
    $region28: #{conv_encoder_forward.1} parent=1 // pred_region
      %509 = dma.done [#allocation4], 16
    $region29: #{conv_encoder_forward.1} parent=1 // pred_fallthru
      _
    %510 = vsyncpa [#allocation3], 1
    %511 = vsyncpa [#allocation4], 1

</llo_original>
